<compile_context>
chip_gen: v5e
topology: v5e:2x2
jax: 0.10.0
libtpu: 0.0.40
codegen_flags: <defaults>
</compile_context>

<pallas_src>
import functools

import jax
import jax.numpy as jnp
from jax import lax
from jax.experimental import pallas as pl
from jax.experimental.pallas import tpu as pltpu


# --------------------------------------------------------------------------
# Kernels
# --------------------------------------------------------------------------

def _netgen_kernel_resident_v(au_ref, v_ref, o_ref, *, tn, fuse_exp):
    # au_ref: (Mcp, TM)  alpha-scaled U columns for this row tile
    # v_ref : (Mcp, Ncols_padded)  full-width resident V (fetched once)
    # o_ref : (TM, TN)  output tile
    j = pl.program_id(1)
    col0 = pl.multiple_of(j * tn, tn)
    v_blk = v_ref[:, pl.ds(col0, tn)]
    acc = lax.dot_general(
        au_ref[...], v_blk,
        dimension_numbers=(((0,), (0,)), ((), ())),
        preferred_element_type=jnp.float32,
    )
    if fuse_exp:
        acc = jnp.exp(acc)
    o_ref[...] = acc.astype(o_ref.dtype)


def _netgen_kernel_ktiled(au_ref, v_ref, o_ref, acc_ref, *, fuse_exp):
    # au_ref: (TK, TM)  v_ref: (TK, TN)  o_ref: (TM, TN)  acc_ref: (TM, TN) f32
    k = pl.program_id(2)

    @pl.when(k == 0)
    def _():
        acc_ref[...] = jnp.zeros_like(acc_ref)

    acc_ref[...] += lax.dot_general(
        au_ref[...], v_ref[...],
        dimension_numbers=(((0,), (0,)), ((), ())),
        preferred_element_type=jnp.float32,
    )

    @pl.when(k == pl.num_programs(2) - 1)
    def _():
        acc = acc_ref[...]
        if fuse_exp:
            acc = jnp.exp(acc)
        o_ref[...] = acc.astype(o_ref.dtype)


# --------------------------------------------------------------------------
# Wrapper helpers
# --------------------------------------------------------------------------

def _chip_info():
    """Best-effort physical-VMEM / device-kind query (fully guarded)."""
    try:
        info = pltpu.get_tpu_info()
        vmem = int(getattr(info, "vmem_capacity_bytes", 128 << 20))
    except Exception:
        vmem = 128 << 20
    try:
        kind = jax.devices()[0].device_kind.lower()
    except Exception:
        kind = ""
    return vmem, kind


def _default_tiles(phys_vmem, kind):
    if phys_vmem <= (64 << 20):   # v7x-class: 64 MiB VMEM, very fast HBM
        return 1024, 2048
    if "v5" in kind:              # v5e: modest per-step overhead already
        return 1024, 2048
    return 2048, 2048             # v6e-class: 128 MiB VMEM


def _pick_tiles(N, tm, tn):
    """Clamp tiles to N and keep >= 2 parallel grid blocks (v7x megacore)."""
    tm = min(tm, N)
    tn = min(tn, N)
    while pl.cdiv(N, tm) * pl.cdiv(N, tn) < 2 and tm % 256 == 0:
        tm //= 2
    return tm, tn


def _round_up(x, m):
    return -(-x // m) * m


# --------------------------------------------------------------------------
# Public entry points
# --------------------------------------------------------------------------

def network_log_weights(alpha, U, V, *, out_dtype=jnp.float32,
                        apply_exp=False, tm=None, tn=None,
                        force_k_tiled=False):
    """M_ij = sum_m alpha_m * U[m,i] * V[m,j]; optionally exp() fused in."""
    Mc, N = U.shape
    assert V.shape == (Mc, N)
    assert alpha.shape == (Mc,)

    # Fold alpha into U once (reused across every output tile).
    AU = (alpha[:, None] * U).astype(jnp.float32)
    Vf = V.astype(jnp.float32)

    # Pad the contraction dim to a multiple of 8 (f32 sublane tile).
    Mcp = _round_up(Mc, 8)
    if Mcp != Mc:
        AU = jnp.pad(AU, ((0, Mcp - Mc), (0, 0)))
        Vf = jnp.pad(Vf, ((0, Mcp - Mc), (0, 0)))

    phys_vmem, kind = _chip_info()
    d_tm, d_tn = _default_tiles(phys_vmem, kind)
    tm = d_tm if tm is None else tm
    tn = d_tn if tn is None else tn

    out_isz = jnp.dtype(out_dtype).itemsize
    vmem_cap = (56 << 20) if phys_vmem <= (64 << 20) else (100 << 20)

    # ---- path selection -------------------------------------------------
    tm_r, tn_r = _pick_tiles(N, tm, tn)
    n_pad_v = pl.cdiv(N, tn_r) * tn_r
    resident_v_bytes = 2 * 4 * Mcp * n_pad_v      # double-buffered resident V
    use_resident = (not force_k_tiled) and resident_v_bytes <= (12 << 20)

    if use_resident:
        # ------------------------------------------------------------------
        # Resident-V path: V loaded into VMEM exactly once, no re-streaming.
        # ------------------------------------------------------------------
        tm_, tn_ = tm_r, tn_r
        rows, cols = pl.cdiv(N, tm_), pl.cdiv(N, tn_)
        Vr = Vf if n_pad_v == N else jnp.pad(Vf, ((0, 0), (0, n_pad_v - N)))

        cost = pl.CostEstimate(
            flops=2 * Mcp * N * N,
            transcendentals=(N * N if apply_exp else 0),
            bytes_accessed=out_isz * N * N + 4 * Mcp * (N + n_pad_v),
        )
        vmem_need = (2 * out_isz * tm_ * tn_      # double-buffered output
                     + 2 * 4 * Mcp * tm_          # double-buffered AU block
                     + resident_v_bytes           # resident V
                     + (4 << 20))                 # slack
        vmem_limit = int(min(max(vmem_need, 32 << 20), vmem_cap))

        kernel = functools.partial(_netgen_kernel_resident_v,
                                   tn=tn_, fuse_exp=apply_exp)
        return pl.pallas_call(
            kernel,
            out_shape=jax.ShapeDtypeStruct((N, N), out_dtype),
            grid_spec=pltpu.PrefetchScalarGridSpec(
                num_scalar_prefetch=0,
                grid=(rows, cols),
                in_specs=[
                    pl.BlockSpec((Mcp, tm_), lambda i, j: (0, i)),
                    pl.BlockSpec((Mcp, n_pad_v), lambda i, j: (0, 0)),
                ],
                out_specs=pl.BlockSpec((tm_, tn_), lambda i, j: (i, j)),
            ),
            compiler_params=pltpu.CompilerParams(
                dimension_semantics=("parallel", "parallel"),
                vmem_limit_bytes=vmem_limit,
            ),
            cost_estimate=cost,
        )(AU, Vr)

    # ----------------------------------------------------------------------
    # K-tiled path: stream (tk, tm)/(tk, tn) blocks over an "arbitrary" Mc
    # axis with a VMEM f32 accumulator.  Keeps VMEM bounded for huge Mc.
    # ----------------------------------------------------------------------
    tm_, tn_ = _pick_tiles(N, min(tm, 512), min(tn, 1024))
    tk = min(512, Mcp)
    Mck = _round_up(Mcp, tk)
    if Mck != Mcp:
        AU = jnp.pad(AU, ((0, Mck - Mcp), (0, 0)))
        Vf = jnp.pad(Vf, ((0, Mck - Mcp), (0, 0)))

    rows, cols, kblk = pl.cdiv(N, tm_), pl.cdiv(N, tn_), Mck // tk
    cost = pl.CostEstimate(
        flops=2 * Mck * N * N,
        transcendentals=(N * N if apply_exp else 0),
        bytes_accessed=out_isz * N * N + 4 * Mck * N * (rows + cols),
    )
    vmem_need = (2 * out_isz * tm_ * tn_         # double-buffered output
                 + 4 * tm_ * tn_                 # f32 accumulator scratch
                 + 2 * 4 * tk * (tm_ + tn_)      # double-buffered inputs
                 + (4 << 20))
    vmem_limit = int(min(max(vmem_need, 32 << 20), vmem_cap))

    kernel = functools.partial(_netgen_kernel_ktiled, fuse_exp=apply_exp)
    return pl.pallas_call(
        kernel,
        out_shape=jax.ShapeDtypeStruct((N, N), out_dtype),
        grid_spec=pltpu.PrefetchScalarGridSpec(
            num_scalar_prefetch=0,
            grid=(rows, cols, kblk),
            in_specs=[
                pl.BlockSpec((tk, tm_), lambda i, j, k: (k, i)),
                pl.BlockSpec((tk, tn_), lambda i, j, k: (k, j)),
            ],
            out_specs=pl.BlockSpec((tm_, tn_), lambda i, j, k: (i, j)),
            scratch_shapes=[pltpu.VMEM((tm_, tn_), jnp.float32)],
        ),
        compiler_params=pltpu.CompilerParams(
            dimension_semantics=("parallel", "parallel", "arbitrary"),
            vmem_limit_bytes=vmem_limit,
        ),
        cost_estimate=cost,
    )(AU, Vf)


def network_weights(alpha, U, V, **kw):
    """W = exp(M) with exp fused into the kernel store (free EUP slot)."""
    return network_log_weights(alpha, U, V, apply_exp=True, **kw)


def init_params(key, N, Mc, normalize=True, loc=0.0, std=1.0):
    """Deterministic parameter init mirroring NetworkGenerator.__init__ (f32)."""
    ka, ku, kv = jax.random.split(key, 3)
    alpha = jax.random.normal(ka, (Mc,), dtype=jnp.float32) / jnp.sqrt(
        jnp.float32(Mc))
    U = jax.random.normal(ku, (Mc, N), dtype=jnp.float32) * std + loc
    V = jax.random.normal(kv, (Mc, N), dtype=jnp.float32) * std + loc
    if normalize:
        U = U / jnp.linalg.norm(U, axis=1, keepdims=True)
        V = V / jnp.linalg.norm(V, axis=1, keepdims=True)
    return alpha, U, V


if __name__ == "__main__":
    # Small config: N nodes, Mc low-rank components.
    N, Mc = 256, 8
    key = jax.random.PRNGKey(0)
    alpha, U, V = init_params(key, N, Mc)

    # Pure-JAX reference of the same math (f32).
    ref = (alpha[:, None] * U).T @ V

    # 1) Default forward(): log-weights M via the resident-V fast path.
    log_w = jax.block_until_ready(network_log_weights(alpha, U, V))
    assert log_w.shape == (N, N)
    assert jnp.allclose(log_w, ref, atol=1e-5, rtol=1e-5)

    # 2) get_network_weights(): W = exp(M), exp fused in-kernel.
    w = jax.block_until_ready(network_weights(alpha, U, V))
    assert jnp.allclose(w, jnp.exp(ref), atol=1e-4, rtol=1e-4)

    # 3) Large-Mc structural path (k-tiled accumulator), forced for coverage.
    log_w_kt = jax.block_until_ready(
        network_log_weights(alpha, U, V, force_k_tiled=True))
    assert jnp.allclose(log_w_kt, ref, atol=1e-5, rtol=1e-5)

    print("KERNEL_OK")
</pallas_src>

<mosaic_0001>
module attributes {stable_mosaic.version = 11 : i64} {
  func.func @_netgen_kernel_resident_v(%arg0: i32, %arg1: i32, %arg2: memref<8x128xf32, #tpu.memory_space<vmem>>, %arg3: memref<8x256xf32, #tpu.memory_space<vmem>>, %arg4: memref<128x256xf32, #tpu.memory_space<vmem>>) attributes {dimension_semantics = [#tpu.dimension_semantics<parallel>, #tpu.dimension_semantics<parallel>], iteration_bounds = array<i64: 2, 1>, scalar_prefetch = 0 : i64, scratch_operands = 0 : i64, tpu.core_type = #tpu.core_type<tc>, window_params = [{transform_indices = @transform_0, window_bounds = array<i64: 8, 128>}, {pipeline_mode = #tpu.pipeline_mode<synchronous>, transform_indices = @transform_1, window_bounds = array<i64: 8, 256>}, {transform_indices = @transform_2, window_bounds = array<i64: 128, 256>}]} {
    %c256_i32 = arith.constant 256 : i32
    %0 = arith.muli %arg1, %c256_i32 : i32
    %1 = tpu.assume_multiple %0, 256 : i32
    %c0 = arith.constant 0 : index
    %2 = arith.index_cast %1 : i32 to index
    %3 = vector.load %arg3[%c0, %2] : memref<8x256xf32, #tpu.memory_space<vmem>>, vector<8x256xf32>
    %c0_0 = arith.constant 0 : index
    %c0_1 = arith.constant 0 : index
    %4 = vector.load %arg2[%c0_0, %c0_1] : memref<8x128xf32, #tpu.memory_space<vmem>>, vector<8x128xf32>
    %cst = arith.constant dense<0.000000e+00> : vector<128x256xf32>
    %5 = tpu.matmul %4, %3, %cst {dimension_numbers = #tpu.dot_dimension_numbers<[0], [0], [1], [1], [0, 1, 1, 1], [], []>} : vector<8x128xf32>, vector<8x256xf32>, vector<128x256xf32> -> vector<128x256xf32>
    %c0_2 = arith.constant 0 : index
    %c0_3 = arith.constant 0 : index
    %6 = vector.load %arg4[%c0_2, %c0_3] : memref<128x256xf32, #tpu.memory_space<vmem>>, vector<128x256xf32>
    tpu.vector_store %arg4[%c0_2, %c0_3], %5 {strides = array<i32>} : memref<128x256xf32, #tpu.memory_space<vmem>>, vector<128x256xf32>,
    return
  }
  func.func @transform_0(%arg0: i32, %arg1: i32) -> (i32, i32) {
    %c0_i32 = arith.constant 0 : i32
    %c0_i32_0 = arith.constant 0 : i32
    return %c0_i32, %arg0 : i32, i32
  }
  func.func @transform_1(%arg0: i32, %arg1: i32) -> (i32, i32) {
    %c0_i32 = arith.constant 0 : i32
    %c0_i32_0 = arith.constant 0 : i32
    %c0_i32_1 = arith.constant 0 : i32
    return %c0_i32, %c0_i32_0 : i32, i32
  }
  func.func @transform_2(%arg0: i32, %arg1: i32) -> (i32, i32) {
    %c0_i32 = arith.constant 0 : i32
    return %arg0, %arg1 : i32, i32
  }
}

</mosaic_0001>

<llo_original>
// kernel: tpu_custom_call.1
$region0: #{tpu_custom_call.1}
  #allocation0 [shape = 'u32[]', space=smem, size = 0x4, offset = 0x4, fixed_abs, tag = 'smem constant byte address 0x4 - core index']
  #allocation1 [shape = 'u32[72,128]{1,0:T(1,128)}', space=vmem, size = 0x9000, scoped, tag = 'internal scratch']
  %s0 = inlined_call_operand.hbm [shape: f32[8,256], index: 0, kind: input, shape index: {}]
  %s1 = inlined_call_operand.hbm [shape: f32[8,256], index: 1, kind: input, shape index: {}]
  %s2 = inlined_call_operand.hbm [shape: f32[256,256], index: 2, kind: output, shape index: {}]
  %s3 = sld [smem:[#allocation0]]
  $region49: #{tpu_custom_call.1} parent=0
    _
  %s5 = ssub.s32 1, %s3
  %s6 = scalar_select 0, %s5, %s3
  $region1: #{tpu_custom_call.1} parent=0
    #allocation2 [shape = 'u8[8192]{0}', space=vmem, size = 0x2000, scoped, tag = 'input window, operand 0']
    #allocation3 [shape = 's32[2]{0}', space=sflag, size = 0x8, scoped, tag = 'scoped memory for tpu_custom_call.1']
    #allocation4 [shape = 's32[2]{0}', space=sflag, size = 0x8, scoped, tag = 'scoped memory for tpu_custom_call.1']
    #allocation5 [shape = 'u8[8192]{0}', space=vmem, size = 0x2000, scoped, tag = 'input window, operand 1, single buffered']
    #allocation6 [shape = 's32[1]{0}', space=sflag, size = 0x4, scoped, tag = 'scoped memory for tpu_custom_call.1']
    #allocation7 [shape = 'u8[262144]{0}', space=vmem, size = 0x40000, scoped, tag = 'output window, operand 0']
    %7 = vsyncpa [#allocation3], 0
    %s8 = scalar_lea.sflag [#allocation3], 1
    %9 = vsyncpa %s8, 0
    %10 = vsyncpa [#allocation6], 0
    %11 = vsyncpa [#allocation4], 0
    %s12 = scalar_lea.sflag [#allocation4], 1
    %13 = vsyncpa %s12, 0
    loop: start=0, step=1, limit=4
    $region2: #{tpu_custom_call.1} parent=1 // loop_pre_header
      _
    $region3: #{tpu_custom_call.1} parent=1 // loop_header
      %s15 = sphi 0, %s19
      %p16 = scmp.ge.s32.totalorder %s15, 4
      %s22 = sphi 0, %s34
      %s23 = sphi 0, %s30
      %s24 = sphi 0, %s22
      %s25 = sphi 0, %s23
      %s26 = sphi 0, %s24
      %s27 = sphi 0, %s25
      %s37 = sphi 0, %s39
      %s40 = sphi 0, %s37
      %s41 = sphi 0, %s40
      %s57 = sphi 0, %s41
      %s61 = sphi 0, %s61
      %s63 = sphi 0, %s61
      %s64 = sphi 0, %s63
      %s78 = sphi 0, %s64
      %s86 = sphi 0, %s88
      %s89 = sphi 0, %s86
      %s90 = sphi 0, %s89
      %s106 = sphi 0, %s90
    $region4: #{tpu_custom_call.1} parent=1 // loop_header_branch
      %18 = sbr.rel (%p16) target = $region8
    $region5: #{tpu_custom_call.1} parent=1 // loop_body
      %s20 = ssub.s32 %s15, 1
      %s21 = ssub.s32 %s15, 2
      %s28 = sadd.s32 1, %s23
      %p29 = scmp.ge.s32.totalorder %s28, 1
      %s30 = scalar_select %p29, 0, %s28
      %s31 = sadd.s32 1, %s22
      %s32 = scalar_select %p29, %s31, %s22
      %p33 = scmp.ge.s32.totalorder %s32, 2
      %s34 = scalar_select %p33, 0, %s32
      %s35 = ssub.s32 %s22, %s34
      %p36 = scmp.eq.s32.totalorder %s35, 0
      %s38 = sadd.s32 %s37, 1
      %s39 = scalar_select %p36, %s37, %s38
      %p42 = pneg %p36
      %p43 = scmp.eq.s32.totalorder %s15, 1
      %p44 = por %p42, %p43
      %p45 = scmp.ne.s32.totalorder %s37, %s40
      %p46 = scmp.eq.s32.totalorder %s15, 0
      %p47 = por %p45, %p46
      %p48 = scmp.ne.s32.totalorder %s37, %s40
      %p49 = scmp.eq.s32.totalorder %s20, 1
      %p50 = por %p48, %p49
      %p51 = scmp.ne.s32.totalorder %s40, %s41
      %p52 = scmp.eq.s32.totalorder %s20, 0
      %p53 = por %p51, %p52
      %p54 = scmp.ne.s32.totalorder %s40, %s41
      %p55 = scmp.eq.s32.totalorder %s21, 1
      %p56 = por %p54, %p55
      %p58 = scmp.ne.s32.totalorder %s41, %s57
      %p59 = scmp.eq.s32.totalorder %s21, 0
      %p60 = por %p58, %p59
      %s62 = sadd.s32 %s61, 1
      %p65 = scmp.eq.s32.totalorder %s15, 1
      %p66 = scmp.ne.s32.totalorder %s61, %s63
      %p67 = scmp.eq.s32.totalorder %s15, 0
      %p68 = por %p66, %p67
      %p69 = scmp.ne.s32.totalorder %s61, %s63
      %p70 = scmp.eq.s32.totalorder %s20, 1
      %p71 = por %p69, %p70
      %p72 = scmp.ne.s32.totalorder %s63, %s64
      %p73 = scmp.eq.s32.totalorder %s20, 0
      %p74 = por %p72, %p73
      %p75 = scmp.ne.s32.totalorder %s63, %s64
      %p76 = scmp.eq.s32.totalorder %s21, 1
      %p77 = por %p75, %p76
      %p79 = scmp.ne.s32.totalorder %s64, %s78
      %p80 = scmp.eq.s32.totalorder %s21, 0
      %p81 = por %p79, %p80
      %s82 = ssub.s32 %s22, %s34
      %s83 = ssub.s32 %s23, %s30
      %s84 = sor.u32 %s82, %s83
      %p85 = scmp.eq.s32.totalorder %s84, 0
      %s87 = sadd.s32 %s86, 1
      %s88 = scalar_select %p85, %s86, %s87
      %p91 = pneg %p85
      %p92 = scmp.eq.s32.totalorder %s15, 1
      %p93 = por %p91, %p92
      %p94 = scmp.ne.s32.totalorder %s86, %s89
      %p95 = scmp.eq.s32.totalorder %s15, 0
      %p96 = por %p94, %p95
      %p97 = scmp.ne.s32.totalorder %s86, %s89
      %p98 = scmp.eq.s32.totalorder %s20, 1
      %p99 = por %p97, %p98
      %p100 = scmp.ne.s32.totalorder %s89, %s90
      %p101 = scmp.eq.s32.totalorder %s20, 0
      %p102 = por %p100, %p101
      %p103 = scmp.ne.s32.totalorder %s89, %s90
      %p104 = scmp.eq.s32.totalorder %s21, 1
      %p105 = por %p103, %p104
      %p107 = scmp.ne.s32.totalorder %s90, %s106
      %p108 = scmp.eq.s32.totalorder %s21, 0
      %p109 = por %p107, %p108
      %p110 = scmp.le.s32.totalorder 1, %s15
      %p111 = scmp.lt.s32.totalorder %s15, 3
      %p112 = pnand %p110, %p111
      %p113 = pneg %p112
      // Predicated region
      $region9: #{tpu_custom_call.1} parent=5 // pred_check
        _
      $region10: #{tpu_custom_call.1} parent=5 // pred_check_branch
        %115 = sbr.rel (%p112) target = $region12
      $region11: #{tpu_custom_call.1} parent=5 // pred_region
        %s116 = ssub.s32 %s15, 1
        // Predicated region
        $region13: #{tpu_custom_call.1} parent=11 // pred_check
          %p117 = pneg %p74
        $region14: #{tpu_custom_call.1} parent=11 // pred_check_branch
          %119 = sbr.rel (%p117) target = $region16
        $region15: #{tpu_custom_call.1} parent=11 // pred_region
          %121 = vsyncadd [#allocation6], 0
          %s123 = sshll.u32 %s1, 4
          %s124 = int_to_ptr.hbm [resolvable:$true] %s123
          %s125 = sshll.u32 [#allocation5], 4
          %s126 = int_to_ptr.vmem [resolvable:$true] %s125
          %128 = dma.hbm_to_vmem [thread:$0]  %s124, 256, %s126, [#allocation6]
        $region16: #{tpu_custom_call.1} parent=11 // pred_fallthru
          _
      $region12: #{tpu_custom_call.1} parent=5 // pred_fallthru
        _
      %p129 = scmp.lt.s32.totalorder %s15, 2
      // Predicated region
      $region17: #{tpu_custom_call.1} parent=5 // pred_check
        %p130 = pneg %p129
      $region18: #{tpu_custom_call.1} parent=5 // pred_check_branch
        %132 = sbr.rel (%p130) target = $region20
      $region19: #{tpu_custom_call.1} parent=5 // pred_region
        // Predicated region
        $region21: #{tpu_custom_call.1} parent=19 // pred_check
          %p133 = pneg %p47
        $region22: #{tpu_custom_call.1} parent=19 // pred_check_branch
          %135 = sbr.rel (%p133) target = $region24
        $region23: #{tpu_custom_call.1} parent=19 // pred_region
          %s136 = sand.u32 %s37, 1
          %s137 = scalar_lea.sflag [#allocation3], %s136
          %s138 = sand.u32 %s37, 1
          %s139 = smul.addr %s138, 8
          %s140 = scalar_lea.vmem [#allocation2], %s139
          %142 = vsyncadd %s137, 0
          %s143 = smul.addr %s22, 8
          %s144 = scalar_lea.hbm %s0, %s143
          %s146 = sshll.u32 %s144, 4
          %s147 = int_to_ptr.hbm [resolvable:$true] %s146
          %s148 = sshll.u32 %s140, 4
          %s149 = int_to_ptr.vmem [resolvable:$true] %s148
          %151 = dma.hbm_to_vmem [thread:$0]  %s147, 128, %s149, %s137
        $region24: #{tpu_custom_call.1} parent=19 // pred_fallthru
          _
      $region20: #{tpu_custom_call.1} parent=5 // pred_fallthru
        _
      %p152 = scmp.le.s32.totalorder 1, %s15
      %p153 = scmp.lt.s32.totalorder %s15, 3
      %p154 = pnand %p152, %p153
      %p155 = pneg %p154
      // Predicated region
      $region25: #{tpu_custom_call.1} parent=5 // pred_check
        _
      $region26: #{tpu_custom_call.1} parent=5 // pred_check_branch
        %157 = sbr.rel (%p154) target = $region28
      $region27: #{tpu_custom_call.1} parent=5 // pred_region
        %s158 = ssub.s32 %s15, 1
        %s159 = sand.u32 %s40, 1
        %s160 = scalar_lea.sflag [#allocation3], %s159
        %s161 = sand.u32 %s40, 1
        %s162 = smul.addr %s161, 8
        %s163 = scalar_lea.vmem [#allocation2], %s162
        // Predicated region
        $region29: #{tpu_custom_call.1} parent=27 // pred_check
          %p164 = pneg %p53
        $region30: #{tpu_custom_call.1} parent=27 // pred_check_branch
          %166 = sbr.rel (%p164) target = $region32
        $region31: #{tpu_custom_call.1} parent=27 // pred_region
          %168 = dma.done %s160, 128
        $region32: #{tpu_custom_call.1} parent=27 // pred_fallthru
          _
        // Predicated region
        $region33: #{tpu_custom_call.1} parent=27 // pred_check
          %p169 = pneg %p74
        $region34: #{tpu_custom_call.1} parent=27 // pred_check_branch
          %171 = sbr.rel (%p169) target = $region36
        $region35: #{tpu_custom_call.1} parent=27 // pred_region
          %173 = dma.done [#allocation6], 256
        $region36: #{tpu_custom_call.1} parent=27 // pred_fallthru
          _
        %s174 = sand.u32 %s40, 1
        %s175 = scalar_lea.sflag [#allocation3], %s174
        %s176 = sand.u32 %s40, 1
        %s177 = smul.addr %s176, 8
        %s178 = scalar_lea.vmem [#allocation2], %s177
        %p179 = pneg %p53
        %p180 = pneg %p50
        %p181 = pneg %p74
        %p182 = pneg %p71
        %p183 = pneg %p102
        %p184 = pneg %p99
        %s185 = sand.u32 %s89, 1
        %s186 = scalar_lea.sflag [#allocation4], %s185
        %s187 = sand.u32 %s89, 1
        %s188 = smul.addr %s187, 256
        %s189 = scalar_lea.vmem [#allocation7], %s188
        %s190 = smul.u32 16, %s24
        %s191 = smul.u32 2, %s25
        %s192 = smul.u32 %s25, 256
        %s193 = sshra.s32 %s192, 7
        %s194 = sand.u32 %s192, 127
        %s195 = smul.addr %s193, 8
        %s196 = scalar_lea.vmem [#allocation5], %s195
        %v197 = vld [vmem:[%s196] sm:$0xff]
        %v198 = vld [vmem:[%s196 + $0x8] sm:$0xff]
        %v199 = vld [vmem:[%s163] sm:$0xff]
        %200 = vxpose.xlu0.b32.start [1/16] %v199, 128
        %201 = vxpose.xlu0.b32.cont [2/16] 0.0, 128
        %202 = vxpose.xlu0.b32.cont [3/16] 0.0, 128
        %203 = vxpose.xlu0.b32.cont [4/16] 0.0, 128
        %204 = vxpose.xlu0.b32.cont [5/16] 0.0, 128
        %205 = vxpose.xlu0.b32.cont [6/16] 0.0, 128
        %206 = vxpose.xlu0.b32.cont [7/16] 0.0, 128
        %207 = vxpose.xlu0.b32.cont [8/16] 0.0, 128
        %208 = vxpose.xlu0.b32.cont [9/16] 0.0, 128
        %209 = vxpose.xlu0.b32.cont [10/16] 0.0, 128
        %210 = vxpose.xlu0.b32.cont [11/16] 0.0, 128
        %211 = vxpose.xlu0.b32.cont [12/16] 0.0, 128
        %212 = vxpose.xlu0.b32.cont [13/16] 0.0, 128
        %213 = vxpose.xlu0.b32.cont [14/16] 0.0, 128
        %214 = vxpose.xlu0.b32.cont [15/16] 0.0, 128
        %215 = vxpose.xlu0.b32.end [16/16] 0.0, 128
        %v216 = vpop.trf.xlu0
        %v217 = vpop.trf.xlu0
        %v218 = vpop.trf.xlu0
        %v219 = vpop.trf.xlu0
        %v220 = vpop.trf.xlu0
        %v221 = vpop.trf.xlu0
        %v222 = vpop.trf.xlu0
        %v223 = vpop.trf.xlu0
        %v224 = vpop.trf.xlu0
        %v225 = vpop.trf.xlu0
        %v226 = vpop.trf.xlu0
        %v227 = vpop.trf.xlu0
        %v228 = vpop.trf.xlu0
        %v229 = vpop.trf.xlu0
        %v230 = vpop.trf.xlu0
        %v231 = vpop.trf.xlu0
        %vm232 = vcmask 64512
        %v234 = vsel %vm232, %v216, 0
        %v237 = vsel %vm232, %v217, 0
        %v240 = vsel %vm232, %v218, 0
        %v243 = vsel %vm232, %v219, 0
        %v246 = vsel %vm232, %v220, 0
        %v249 = vsel %vm232, %v221, 0
        %v252 = vsel %vm232, %v222, 0
        %v255 = vsel %vm232, %v223, 0
        %v258 = vsel %vm232, %v224, 0
        %v261 = vsel %vm232, %v225, 0
        %v264 = vsel %vm232, %v226, 0
        %v267 = vsel %vm232, %v227, 0
        %v270 = vsel %vm232, %v228, 0
        %v273 = vsel %vm232, %v229, 0
        %v276 = vsel %vm232, %v230, 0
        %v279 = vsel %vm232, %v231, 0
        %281 = vmatpush.msra.mxu0 0.0
        %282 = vmatpush.msra.mxu0 0.0
        %283 = vmatpush.msra.mxu0 0.0
        %284 = vmatpush.msra.mxu0 0.0
        %285 = vmatpush.msra.mxu0 0.0
        %286 = vmatpush.msra.mxu0 0.0
        %287 = vmatpush.msra.mxu0 0.0
        %288 = vmatpush.msra.mxu0 0.0
        %289 = vmatpush.msra.mxu0 0.0
        %290 = vmatpush.msra.mxu0 0.0
        %291 = vmatpush.msra.mxu0 0.0
        %292 = vmatpush.msra.mxu0 0.0
        %293 = vmatpush.msra.mxu0 0.0
        %294 = vmatpush.msra.mxu0 0.0
        %295 = vmatpush.msra.mxu0 0.0
        %296 = vmatpush.msra.mxu0 %v197
        %297 = vmatmul.f32.gmra.mxu0 %v234
        %v298 = vpop.f32.mrf.mxu0
        %v299 = vadd.f32 0.0, %v298
        %300 = vmatmul.f32.gmra.mxu0 %v237
        %v301 = vpop.f32.mrf.mxu0
        %v302 = vadd.f32 0.0, %v301
        %303 = vmatmul.f32.gmra.mxu0 %v240
        %v304 = vpop.f32.mrf.mxu0
        %v305 = vadd.f32 0.0, %v304
        %306 = vmatmul.f32.gmra.mxu0 %v243
        %v307 = vpop.f32.mrf.mxu0
        %v308 = vadd.f32 0.0, %v307
        %309 = vmatmul.f32.gmra.mxu0 %v246
        %v310 = vpop.f32.mrf.mxu0
        %v311 = vadd.f32 0.0, %v310
        %312 = vmatmul.f32.gmra.mxu0 %v249
        %v313 = vpop.f32.mrf.mxu0
        %v314 = vadd.f32 0.0, %v313
        %315 = vmatmul.f32.gmra.mxu0 %v252
        %v316 = vpop.f32.mrf.mxu0
        %v317 = vadd.f32 0.0, %v316
        %318 = vmatmul.f32.gmra.mxu0 %v255
        %v319 = vpop.f32.mrf.mxu0
        %v320 = vadd.f32 0.0, %v319
        %321 = vmatmul.f32.gmra.mxu0 %v258
        %v322 = vpop.f32.mrf.mxu0
        %v323 = vadd.f32 0.0, %v322
        %324 = vmatmul.f32.gmra.mxu0 %v261
        %v325 = vpop.f32.mrf.mxu0
        %v326 = vadd.f32 0.0, %v325
        %327 = vmatmul.f32.gmra.mxu0 %v264
        %v328 = vpop.f32.mrf.mxu0
        %v329 = vadd.f32 0.0, %v328
        %330 = vmatmul.f32.gmra.mxu0 %v267
        %v331 = vpop.f32.mrf.mxu0
        %v332 = vadd.f32 0.0, %v331
        %333 = vmatmul.f32.gmra.mxu0 %v270
        %v334 = vpop.f32.mrf.mxu0
        %v335 = vadd.f32 0.0, %v334
        %336 = vmatmul.f32.gmra.mxu0 %v273
        %v337 = vpop.f32.mrf.mxu0
        %v338 = vadd.f32 0.0, %v337
        %339 = vmatmul.f32.gmra.mxu0 %v276
        %v340 = vpop.f32.mrf.mxu0
        %v341 = vadd.f32 0.0, %v340
        %342 = vmatmul.f32.gmra.mxu0 %v279
        %v343 = vpop.f32.mrf.mxu0
        %v344 = vadd.f32 0.0, %v343
        %345 = vdwg.mxu0
        %346 = vmatpush.msra.mxu0 0.0
        %347 = vmatpush.msra.mxu0 0.0
        %348 = vmatpush.msra.mxu0 0.0
        %349 = vmatpush.msra.mxu0 0.0
        %350 = vmatpush.msra.mxu0 0.0
        %351 = vmatpush.msra.mxu0 0.0
        %352 = vmatpush.msra.mxu0 0.0
        %353 = vmatpush.msra.mxu0 0.0
        %354 = vmatpush.msra.mxu0 0.0
        %355 = vmatpush.msra.mxu0 0.0
        %356 = vmatpush.msra.mxu0 0.0
        %357 = vmatpush.msra.mxu0 0.0
        %358 = vmatpush.msra.mxu0 0.0
        %359 = vmatpush.msra.mxu0 0.0
        %360 = vmatpush.msra.mxu0 0.0
        %361 = vmatpush.msra.mxu0 %v198
        %362 = vmatmul.f32.gmra.mxu0 %v234
        %v363 = vpop.f32.mrf.mxu0
        %v364 = vadd.f32 0.0, %v363
        %365 = vmatmul.f32.gmra.mxu0 %v237
        %v366 = vpop.f32.mrf.mxu0
        %v367 = vadd.f32 0.0, %v366
        %368 = vmatmul.f32.gmra.mxu0 %v240
        %v369 = vpop.f32.mrf.mxu0
        %v370 = vadd.f32 0.0, %v369
        %371 = vmatmul.f32.gmra.mxu0 %v243
        %v372 = vpop.f32.mrf.mxu0
        %v373 = vadd.f32 0.0, %v372
        %374 = vmatmul.f32.gmra.mxu0 %v246
        %v375 = vpop.f32.mrf.mxu0
        %v376 = vadd.f32 0.0, %v375
        %377 = vmatmul.f32.gmra.mxu0 %v249
        %v378 = vpop.f32.mrf.mxu0
        %v379 = vadd.f32 0.0, %v378
        %380 = vmatmul.f32.gmra.mxu0 %v252
        %v381 = vpop.f32.mrf.mxu0
        %v382 = vadd.f32 0.0, %v381
        %383 = vmatmul.f32.gmra.mxu0 %v255
        %v384 = vpop.f32.mrf.mxu0
        %v385 = vadd.f32 0.0, %v384
        %386 = vmatmul.f32.gmra.mxu0 %v258
        %v387 = vpop.f32.mrf.mxu0
        %v388 = vadd.f32 0.0, %v387
        %389 = vmatmul.f32.gmra.mxu0 %v261
        %v390 = vpop.f32.mrf.mxu0
        %v391 = vadd.f32 0.0, %v390
        %392 = vmatmul.f32.gmra.mxu0 %v264
        %v393 = vpop.f32.mrf.mxu0
        %v394 = vadd.f32 0.0, %v393
        %395 = vmatmul.f32.gmra.mxu0 %v267
        %v396 = vpop.f32.mrf.mxu0
        %v397 = vadd.f32 0.0, %v396
        %398 = vmatmul.f32.gmra.mxu0 %v270
        %v399 = vpop.f32.mrf.mxu0
        %v400 = vadd.f32 0.0, %v399
        %401 = vmatmul.f32.gmra.mxu0 %v273
        %v402 = vpop.f32.mrf.mxu0
        %v403 = vadd.f32 0.0, %v402
        %404 = vmatmul.f32.gmra.mxu0 %v276
        %v405 = vpop.f32.mrf.mxu0
        %v406 = vadd.f32 0.0, %v405
        %407 = vmatmul.f32.gmra.mxu0 %v279
        %v408 = vpop.f32.mrf.mxu0
        %v409 = vadd.f32 0.0, %v408
        %410 = vdwg.mxu0
        %411 = vst [vmem:[%s189] sm:$0xff] %v299
        %412 = vst [vmem:[%s189 + $0x8] sm:$0xff] %v364
        %413 = vst [vmem:[%s189 + $0x10] sm:$0xff] %v302
        %414 = vst [vmem:[%s189 + $0x18] sm:$0xff] %v367
        %415 = vst [vmem:[%s189 + $0x20] sm:$0xff] %v305
        %416 = vst [vmem:[%s189 + $0x28] sm:$0xff] %v370
        %417 = vst [vmem:[%s189 + $0x30] sm:$0xff] %v308
        %418 = vst [vmem:[%s189 + $0x38] sm:$0xff] %v373
        %419 = vst [vmem:[%s189 + $0x40] sm:$0xff] %v311
        %420 = vst [vmem:[%s189 + $0x48] sm:$0xff] %v376
        %421 = vst [vmem:[%s189 + $0x50] sm:$0xff] %v314
        %422 = vst [vmem:[%s189 + $0x58] sm:$0xff] %v379
        %423 = vst [vmem:[%s189 + $0x60] sm:$0xff] %v317
        %424 = vst [vmem:[%s189 + $0x68] sm:$0xff] %v382
        %425 = vst [vmem:[%s189 + $0x70] sm:$0xff] %v320
        %426 = vst [vmem:[%s189 + $0x78] sm:$0xff] %v385
        %427 = vst [vmem:[%s189 + $0x80] sm:$0xff] %v323
        %428 = vst [vmem:[%s189 + $0x88] sm:$0xff] %v388
        %429 = vst [vmem:[%s189 + $0x90] sm:$0xff] %v326
        %430 = vst [vmem:[%s189 + $0x98] sm:$0xff] %v391
        %431 = vst [vmem:[%s189 + $0xa0] sm:$0xff] %v329
        %432 = vst [vmem:[%s189 + $0xa8] sm:$0xff] %v394
        %433 = vst [vmem:[%s189 + $0xb0] sm:$0xff] %v332
        %434 = vst [vmem:[%s189 + $0xb8] sm:$0xff] %v397
        %435 = vst [vmem:[%s189 + $0xc0] sm:$0xff] %v335
        %436 = vst [vmem:[%s189 + $0xc8] sm:$0xff] %v400
        %437 = vst [vmem:[%s189 + $0xd0] sm:$0xff] %v338
        %438 = vst [vmem:[%s189 + $0xd8] sm:$0xff] %v403
        %439 = vst [vmem:[%s189 + $0xe0] sm:$0xff] %v341
        %440 = vst [vmem:[%s189 + $0xe8] sm:$0xff] %v406
        %441 = vst [vmem:[%s189 + $0xf0] sm:$0xff] %v344
        %442 = vst [vmem:[%s189 + $0xf8] sm:$0xff] %v409
        %s443 = sand.u32 %s89, 1
        %s444 = scalar_lea.sflag [#allocation4], %s443
        %s445 = sand.u32 %s89, 1
        %s446 = smul.addr %s445, 256
        %s447 = scalar_lea.vmem [#allocation7], %s446
        // Predicated region
        $region37: #{tpu_custom_call.1} parent=27 // pred_check
          %p448 = pneg %p99
        $region38: #{tpu_custom_call.1} parent=27 // pred_check_branch
          %450 = sbr.rel (%p448) target = $region40
        $region39: #{tpu_custom_call.1} parent=27 // pred_region
          %s451 = smul.u32 16, %s24
          %s452 = smul.u32 2, %s25
          %454 = vsyncadd %s444, 0
          %s455 = smul.addr %s451, 2
          %s456 = sadd.s32 %s452, %s455
          %s457 = smul.addr %s456, 8
          %s458 = scalar_lea.hbm %s2, %s457
          %s459 = sshll.u32 %s447, 4
          %s460 = int_to_ptr.vmem [resolvable:$true] %s459
          %s461 = sshll.u32 %s458, 4
          %s462 = int_to_ptr.hbm [resolvable:$true] %s461
          %467 = dma.vmem_to_hbm [thread:$0]  %s460, 4096, %s462, %s444, 256, 256, 16
        $region40: #{tpu_custom_call.1} parent=27 // pred_fallthru
          _
      $region28: #{tpu_custom_call.1} parent=5 // pred_fallthru
        _
      %p468 = scmp.le.s32.totalorder 2, %s15
      // Predicated region
      $region41: #{tpu_custom_call.1} parent=5 // pred_check
        %p469 = pneg %p468
      $region42: #{tpu_custom_call.1} parent=5 // pred_check_branch
        %471 = sbr.rel (%p469) target = $region44
      $region43: #{tpu_custom_call.1} parent=5 // pred_region
        %s472 = ssub.s32 %s15, 2
        // Predicated region
        $region45: #{tpu_custom_call.1} parent=43 // pred_check
          %p473 = pneg %p105
        $region46: #{tpu_custom_call.1} parent=43 // pred_check_branch
          %475 = sbr.rel (%p473) target = $region48
        $region47: #{tpu_custom_call.1} parent=43 // pred_region
          %s476 = sand.u32 %s90, 1
          %s477 = scalar_lea.sflag [#allocation4], %s476
          %s478 = sand.u32 %s90, 1
          %s479 = smul.addr %s478, 256
          %s480 = scalar_lea.vmem [#allocation7], %s479
          %482 = dma.done %s477, 4096
        $region48: #{tpu_custom_call.1} parent=43 // pred_fallthru
          _
      $region44: #{tpu_custom_call.1} parent=5 // pred_fallthru
        _
    $region6: #{tpu_custom_call.1} parent=1 // loop_footer
      %s19 = sadd.s32 1, %s15
    $region7: #{tpu_custom_call.1} parent=1 // loop_footer_branch
      %14 = sbr.rel target = $region3
    $region8: #{tpu_custom_call.1} parent=1 // loop_exit
      _
    %483 = vsyncpa [#allocation3], 1
    %s484 = scalar_lea.sflag [#allocation3], 1
    %485 = vsyncpa %s484, 1
    %486 = vsyncpa [#allocation6], 1
    %487 = vsyncpa [#allocation4], 1
    %s488 = scalar_lea.sflag [#allocation4], 1
    %489 = vsyncpa %s488, 1

</llo_original>
